<compile_context>
chip_gen: v6e
topology: v6e:2x2x1
jax: 0.10.0
libtpu: 0.0.40
codegen_flags: <defaults>
</compile_context>

<pallas_src>
import functools

import jax
import jax.numpy as jnp
from jax.experimental import pallas as pl
from jax.experimental.pallas import tpu as pltpu

LOG_STD_MAX = 2.0
LOG_STD_MIN = -20.0

LANE = 128          # TPU lane width; all packed weights padded to this
HALF = LANE // 2    # log_std head lives in the upper half-lanes


def _round_up(x, m):
    return (x + m - 1) // m * m


def _squashed_gaussian_kernel(
    obs_ref, eps_ref, params_ref, out_ref,
    *, act_limit, obs_dim, w2_off, wh_off, b_off,
):
    obs = obs_ref[...]                                    # [TB, obs_dim] f32

    biases = params_ref[b_off:b_off + 8, :]               # [8, LANE] (3 rows used)
    b1 = biases[0:1, :]
    b2 = biases[1:2, :]
    bh = biases[2:3, :]

    # ---- layer 1: relu(obs @ W1 + b1), lane-padded to LANE -----------------
    w1 = params_ref[0:obs_dim, :]                         # [obs_dim, LANE]
    h = jnp.dot(obs, w1, preferred_element_type=jnp.float32)
    h = jnp.maximum(h + b1, 0.0)                          # cols >= H1 stay 0

    # ---- layer 2: relu(h @ W2 + b2) -----------------------------------------
    w2 = params_ref[w2_off:w2_off + LANE, :]              # [LANE, LANE], padded rows 0
    h = jnp.dot(h, w2, preferred_element_type=jnp.float32)
    h = jnp.maximum(h + b2, 0.0)                          # cols >= H2 stay 0

    # ---- fused mu / log_std head: single GEMM -------------------------------
    wh = params_ref[wh_off:wh_off + LANE, :]              # [LANE, LANE]
    head = jnp.dot(h, wh, preferred_element_type=jnp.float32) + bh
    # head lanes [0, act_dim)          -> mu
    # head lanes [HALF, HALF+act_dim)  -> log_std
    # everything else                  -> 0 (padding)

    # Half-lane rotation brings the log_std lanes onto the mu lanes.
    # (half rotation => direction-agnostic; padded lanes stay finite.)
    log_std = pltpu.roll(head, shift=HALF, axis=1)
    log_std = jnp.clip(log_std, LOG_STD_MIN, LOG_STD_MAX)
    std = jnp.exp(log_std)

    # rsample + squash; eps slab is zero outside the first act_dim lanes.
    pi = head + std * eps_ref[...]
    out_ref[...] = (act_limit * jnp.tanh(pi)).astype(out_ref.dtype)


def pack_params(w1, b1, w2, b2, wmu, bmu, wls, bls):
    """Pack all layers into one [rows, 128] f32 buffer (zero padded).

    Layout (row offsets are multiples of 8 -> tile-aligned ref slices):
      [0, obs_dim)            W1   (cols [0, H1))
      [r1, r1+LANE)           W2   (rows [0, H1), cols [0, H2))
      [r1+LANE, r1+2*LANE)    merged head: Wmu cols [0, act_dim),
                                            Wls cols [HALF, HALF+act_dim)
      [r1+2*LANE, +8)         bias rows: b1 / b2 / (bmu|bls)
    """
    obs_dim, h1 = w1.shape
    _, h2 = w2.shape
    _, act_dim = wmu.shape
    assert h1 <= LANE and h2 <= LANE and act_dim <= HALF

    r1 = _round_up(obs_dim, 8)
    w2_off = r1
    wh_off = r1 + LANE
    b_off = r1 + 2 * LANE
    total_rows = b_off + 8

    p = jnp.zeros((total_rows, LANE), jnp.float32)
    p = p.at[0:obs_dim, 0:h1].set(w1)
    p = p.at[w2_off:w2_off + h1, 0:h2].set(w2)
    p = p.at[wh_off:wh_off + h2, 0:act_dim].set(wmu)
    p = p.at[wh_off:wh_off + h2, HALF:HALF + act_dim].set(wls)
    p = p.at[b_off, 0:h1].set(b1)
    p = p.at[b_off + 1, 0:h2].set(b2)
    p = p.at[b_off + 2, 0:act_dim].set(bmu)
    p = p.at[b_off + 2, HALF:HALF + act_dim].set(bls)

    meta = dict(obs_dim=obs_dim, act_dim=act_dim,
                w2_off=w2_off, wh_off=wh_off, b_off=b_off)
    return p, meta


def squashed_gaussian_forward(obs, eps, packed_params, meta,
                              act_limit=1.0, tile_b=256):
    """Fused forward. obs: [B, obs_dim] f32, eps: [B, act_dim] f32."""
    B, obs_dim = obs.shape
    act_dim = meta["act_dim"]
    assert obs_dim == meta["obs_dim"]
    assert eps.shape == (B, act_dim)

    # Batch tile: multiple of 8 (f32 sublane), no bigger than the padded batch.
    tile_b = max(8, min(_round_up(tile_b, 8), _round_up(B, 8)))
    b_pad = _round_up(B, tile_b)

    obs_p = jnp.zeros((b_pad, obs_dim), jnp.float32).at[:B].set(obs)
    # eps as a lane-dense slab: noise in lanes [0, act_dim), zeros elsewhere.
    eps_p = jnp.zeros((b_pad, LANE), jnp.float32).at[:B, :act_dim].set(eps)

    kernel = functools.partial(
        _squashed_gaussian_kernel,
        act_limit=float(act_limit),
        obs_dim=obs_dim,
        w2_off=meta["w2_off"],
        wh_off=meta["wh_off"],
        b_off=meta["b_off"],
    )

    grid = (b_pad // tile_b,)
    out_pad = pl.pallas_call(
        kernel,
        out_shape=jax.ShapeDtypeStruct((b_pad, LANE), jnp.float32),
        grid=grid,
        in_specs=[
            pl.BlockSpec((tile_b, obs_dim), lambda i: (i, 0)),       # obs tile
            pl.BlockSpec((tile_b, LANE), lambda i: (i, 0)),          # eps slab tile
            pl.BlockSpec(packed_params.shape, lambda i: (0, 0)),     # weights, VMEM-resident
        ],
        out_specs=pl.BlockSpec((tile_b, LANE), lambda i: (i, 0)),    # lane-dense output slab
        compiler_params=pltpu.CompilerParams(
            dimension_semantics=("parallel",)),
    )(obs_p, eps_p, packed_params)

    return out_pad[:B, :act_dim]


def reference_forward(obs, eps, w1, b1, w2, b2, wmu, bmu, wls, bls, act_limit=1.0):
    """Pure-JAX reference mirroring the PyTorch module (rsample path)."""
    h1 = jnp.maximum(obs @ w1 + b1, 0.0)
    h2 = jnp.maximum(h1 @ w2 + b2, 0.0)
    mu = h2 @ wmu + bmu
    log_std = jnp.clip(h2 @ wls + bls, LOG_STD_MIN, LOG_STD_MAX)
    return act_limit * jnp.tanh(mu + jnp.exp(log_std) * eps)


if __name__ == "__main__":
    # Small shapes consistent with the module: obs_dim=16, hidden=(32, 32), act_dim=8.
    B, OBS_DIM, ACT_DIM = 8, 16, 8
    HIDDEN = (32, 32)
    ACT_LIMIT = 1.0

    key = jax.random.PRNGKey(0)
    ks = jax.random.split(key, 10)

    def linear(kw, kb, fan_in, fan_out):
        bound = 1.0 / jnp.sqrt(fan_in)
        w = jax.random.uniform(kw, (fan_in, fan_out), jnp.float32, -bound, bound)
        b = jax.random.uniform(kb, (fan_out,), jnp.float32, -bound, bound)
        return w, b

    w1, b1 = linear(ks[0], ks[1], OBS_DIM, HIDDEN[0])
    w2, b2 = linear(ks[2], ks[3], HIDDEN[0], HIDDEN[1])
    wmu, bmu = linear(ks[4], ks[5], HIDDEN[1], ACT_DIM)
    wls, bls = linear(ks[6], ks[7], HIDDEN[1], ACT_DIM)

    obs = jax.random.normal(ks[8], (B, OBS_DIM), jnp.float32)
    # rsample noise generated on host (deterministic=False path); pass zeros
    # for the deterministic=True path.
    eps = jax.random.normal(ks[9], (B, ACT_DIM), jnp.float32)

    packed, meta = pack_params(w1, b1, w2, b2, wmu, bmu, wls, bls)

    out = squashed_gaussian_forward(obs, eps, packed, meta, act_limit=ACT_LIMIT)
    out = jax.block_until_ready(out)

    ref = reference_forward(obs, eps, w1, b1, w2, b2, wmu, bmu, wls, bls,
                            act_limit=ACT_LIMIT)
    assert out.shape == (B, ACT_DIM)
    assert jnp.allclose(out, ref, atol=1e-5, rtol=1e-5), "mismatch vs reference"

    print("KERNEL_OK")
</pallas_src>

<mosaic_0001>
module attributes {stable_mosaic.version = 11 : i64} {
  func.func @_squashed_gaussian_kernel(%arg0: i32, %arg1: memref<8x16xf32, #tpu.memory_space<vmem>>, %arg2: memref<8x128xf32, #tpu.memory_space<vmem>>, %arg3: memref<280x128xf32, #tpu.memory_space<vmem>>, %arg4: memref<8x128xf32, #tpu.memory_space<vmem>>) attributes {dimension_semantics = [#tpu.dimension_semantics<parallel>], iteration_bounds = array<i64: 1>, scalar_prefetch = 0 : i64, scratch_operands = 0 : i64, tpu.core_type = #tpu.core_type<tc>, window_params = [{transform_indices = @transform_0, window_bounds = array<i64: 8, 16>}, {transform_indices = @transform_1, window_bounds = array<i64: 8, 128>}, {pipeline_mode = #tpu.pipeline_mode<synchronous>, transform_indices = @transform_2, window_bounds = array<i64: 280, 128>}, {transform_indices = @transform_3, window_bounds = array<i64: 8, 128>}]} {
    %c0 = arith.constant 0 : index
    %c0_0 = arith.constant 0 : index
    %0 = vector.load %arg1[%c0, %c0_0] : memref<8x16xf32, #tpu.memory_space<vmem>>, vector<8x16xf32>
    %c272 = arith.constant 272 : index
    %c0_1 = arith.constant 0 : index
    %1 = vector.load %arg3[%c272, %c0_1] : memref<280x128xf32, #tpu.memory_space<vmem>>, vector<8x128xf32>
    %2 = vector.extract_strided_slice %1 {offsets = [0, 0], sizes = [1, 128], strides = [1, 1]} : vector<8x128xf32> to vector<1x128xf32>
    %3 = vector.extract_strided_slice %1 {offsets = [1, 0], sizes = [1, 128], strides = [1, 1]} : vector<8x128xf32> to vector<1x128xf32>
    %4 = vector.extract_strided_slice %1 {offsets = [2, 0], sizes = [1, 128], strides = [1, 1]} : vector<8x128xf32> to vector<1x128xf32>
    %c0_2 = arith.constant 0 : index
    %c0_3 = arith.constant 0 : index
    %5 = vector.load %arg3[%c0_2, %c0_3] : memref<280x128xf32, #tpu.memory_space<vmem>>, vector<16x128xf32>
    %cst = arith.constant dense<0.000000e+00> : vector<8x128xf32>
    %6 = tpu.matmul %0, %5, %cst {dimension_numbers = #tpu.dot_dimension_numbers<[1], [0], [0], [1], [0, 0, 1, 1], [], []>} : vector<8x16xf32>, vector<16x128xf32>, vector<8x128xf32> -> vector<8x128xf32>
    %7 = vector.broadcast %2 : vector<1x128xf32> to vector<8x128xf32>
    %8 = arith.addf %6, %7 : vector<8x128xf32>
    %cst_4 = arith.constant 0.000000e+00 : f32
    %9 = vector.broadcast %cst_4 : f32 to vector<8x128xf32>
    %10 = arith.maximumf %8, %9 : vector<8x128xf32>
    %c16 = arith.constant 16 : index
    %c0_5 = arith.constant 0 : index
    %11 = vector.load %arg3[%c16, %c0_5] : memref<280x128xf32, #tpu.memory_space<vmem>>, vector<128x128xf32>
    %cst_6 = arith.constant dense<0.000000e+00> : vector<8x128xf32>
    %12 = tpu.matmul %10, %11, %cst_6 {dimension_numbers = #tpu.dot_dimension_numbers<[1], [0], [0], [1], [0, 0, 1, 1], [], []>} : vector<8x128xf32>, vector<128x128xf32>, vector<8x128xf32> -> vector<8x128xf32>
    %13 = vector.broadcast %3 : vector<1x128xf32> to vector<8x128xf32>
    %14 = arith.addf %12, %13 : vector<8x128xf32>
    %cst_7 = arith.constant 0.000000e+00 : f32
    %15 = vector.broadcast %cst_7 : f32 to vector<8x128xf32>
    %16 = arith.maximumf %14, %15 : vector<8x128xf32>
    %c144 = arith.constant 144 : index
    %c0_8 = arith.constant 0 : index
    %17 = vector.load %arg3[%c144, %c0_8] : memref<280x128xf32, #tpu.memory_space<vmem>>, vector<128x128xf32>
    %cst_9 = arith.constant dense<0.000000e+00> : vector<8x128xf32>
    %18 = tpu.matmul %16, %17, %cst_9 {dimension_numbers = #tpu.dot_dimension_numbers<[1], [0], [0], [1], [0, 0, 1, 1], [], []>} : vector<8x128xf32>, vector<128x128xf32>, vector<8x128xf32> -> vector<8x128xf32>
    %19 = vector.broadcast %4 : vector<1x128xf32> to vector<8x128xf32>
    %20 = arith.addf %18, %19 : vector<8x128xf32>
    %c64_i32 = arith.constant 64 : i32
    %21 = tpu.dynamic_rotate %20 by %c64_i32 dim 1 : vector<8x128xf32>, i32 -> vector<8x128xf32>
    %cst_10 = arith.constant -2.000000e+01 : f32
    %cst_11 = arith.constant 2.000000e+00 : f32
    %22 = vector.broadcast %cst_10 : f32 to vector<8x128xf32>
    %23 = arith.maximumf %22, %21 : vector<8x128xf32>
    %24 = vector.broadcast %cst_11 : f32 to vector<8x128xf32>
    %25 = arith.minimumf %24, %23 : vector<8x128xf32>
    %26 = math.exp %25 : vector<8x128xf32>
    %c0_12 = arith.constant 0 : index
    %c0_13 = arith.constant 0 : index
    %27 = vector.load %arg2[%c0_12, %c0_13] : memref<8x128xf32, #tpu.memory_space<vmem>>, vector<8x128xf32>
    %28 = arith.mulf %26, %27 : vector<8x128xf32>
    %29 = arith.addf %20, %28 : vector<8x128xf32>
    %30 = math.tanh %29 : vector<8x128xf32>
    %cst_14 = arith.constant 1.000000e+00 : f32
    %31 = vector.broadcast %cst_14 : f32 to vector<8x128xf32>
    %32 = arith.mulf %31, %30 : vector<8x128xf32>
    %c0_15 = arith.constant 0 : index
    %c0_16 = arith.constant 0 : index
    %33 = vector.load %arg4[%c0_15, %c0_16] : memref<8x128xf32, #tpu.memory_space<vmem>>, vector<8x128xf32>
    tpu.vector_store %arg4[%c0_15, %c0_16], %32 {strides = array<i32>} : memref<8x128xf32, #tpu.memory_space<vmem>>, vector<8x128xf32>,
    return
  }
  func.func @transform_0(%arg0: i32) -> (i32, i32) {
    %c0_i32 = arith.constant 0 : i32
    %c0_i32_0 = arith.constant 0 : i32
    return %arg0, %c0_i32 : i32, i32
  }
  func.func @transform_1(%arg0: i32) -> (i32, i32) {
    %c0_i32 = arith.constant 0 : i32
    %c0_i32_0 = arith.constant 0 : i32
    return %arg0, %c0_i32 : i32, i32
  }
  func.func @transform_2(%arg0: i32) -> (i32, i32) {
    %c0_i32 = arith.constant 0 : i32
    %c0_i32_0 = arith.constant 0 : i32
    %c0_i32_1 = arith.constant 0 : i32
    return %c0_i32, %c0_i32_0 : i32, i32
  }
  func.func @transform_3(%arg0: i32) -> (i32, i32) {
    %c0_i32 = arith.constant 0 : i32
    %c0_i32_0 = arith.constant 0 : i32
    return %arg0, %c0_i32 : i32, i32
  }
}

</mosaic_0001>

<llo_original>
// kernel: tpu_custom_call.1
$region0: #{tpu_custom_call.1}
  #allocation0 [shape = 'u32[]', space=smem, size = 0x4, offset = 0x4, fixed_abs, tag = 'smem constant byte address 0x4 - core index']
  #allocation1 [shape = 'u32[144,128]{1,0:T(1,128)}', space=vmem, size = 0x12000, scoped, tag = 'internal scratch']
  %s0 = inlined_call_operand.hbm [shape: f32[8,16], index: 0, kind: input, shape index: {}]
  %s1 = inlined_call_operand.hbm [shape: f32[8,128], index: 1, kind: input, shape index: {}]
  %s2 = inlined_call_operand.hbm [shape: f32[280,128], index: 2, kind: input, shape index: {}]
  %s3 = inlined_call_operand.hbm [shape: f32[8,128], index: 3, kind: output, shape index: {}]
  %s4 = sld [smem:[#allocation0]]
  $region34: #{tpu_custom_call.1} parent=0
    _
  %s6 = ssub.s32 1, %s4
  %s7 = scalar_select 0, %s6, %s4
  $region1: #{tpu_custom_call.1} parent=0
    #allocation2 [shape = 'u8[4096]{0}', space=vmem, size = 0x1000, scoped, tag = 'input window, operand 0, single buffered']
    #allocation3 [shape = 's32[1]{0}', space=sflag, size = 0x4, scoped, tag = 'scoped memory for tpu_custom_call.1']
    #allocation4 [shape = 's32[1]{0}', space=sflag, size = 0x4, scoped, tag = 'scoped memory for tpu_custom_call.1']
    #allocation5 [shape = 'u8[4096]{0}', space=vmem, size = 0x1000, scoped, tag = 'input window, operand 1, single buffered']
    #allocation6 [shape = 's32[1]{0}', space=sflag, size = 0x4, scoped, tag = 'scoped memory for tpu_custom_call.1']
    #allocation7 [shape = 'u8[143360]{0}', space=vmem, size = 0x23000, scoped, tag = 'input window, operand 2, single buffered']
    #allocation8 [shape = 'u8[4096]{0}', space=vmem, size = 0x1000, scoped, tag = 'output window, operand 0, single buffered']
    %8 = vsyncpa [#allocation3], 0
    %9 = vsyncpa [#allocation6], 0
    %10 = vsyncpa [#allocation4], 0
    // Predicated region
    $region2: #{tpu_custom_call.1} parent=1 // pred_check
      _
    $region3: #{tpu_custom_call.1} parent=1 // pred_check_branch
      %12 = sbr.rel (0) target = $region5
    $region4: #{tpu_custom_call.1} parent=1 // pred_region
      %s14 = ssub.s32 128, 128
      %15 = vsyncadd [#allocation3], %s14
      %s17 = sshll.u32 [#allocation2], 4
      %s18 = int_to_ptr.vmem [resolvable:$true] %s17
      %20 = dma.hbm_to_vmem [thread:$0]  %s0, 128, %s18, [#allocation3]
    $region5: #{tpu_custom_call.1} parent=1 // pred_fallthru
      _
    // Predicated region
    $region6: #{tpu_custom_call.1} parent=1 // pred_check
      _
    $region7: #{tpu_custom_call.1} parent=1 // pred_check_branch
      %22 = sbr.rel (0) target = $region9
    $region8: #{tpu_custom_call.1} parent=1 // pred_region
      %s24 = ssub.s32 128, 128
      %25 = vsyncadd [#allocation6], %s24
      %s27 = sshll.u32 [#allocation5], 4
      %s28 = int_to_ptr.vmem [resolvable:$true] %s27
      %30 = dma.hbm_to_vmem [thread:$0]  %s1, 128, %s28, [#allocation6]
    $region9: #{tpu_custom_call.1} parent=1 // pred_fallthru
      _
    // Predicated region
    $region10: #{tpu_custom_call.1} parent=1 // pred_check
      _
    $region11: #{tpu_custom_call.1} parent=1 // pred_check_branch
      %32 = sbr.rel (0) target = $region13
    $region12: #{tpu_custom_call.1} parent=1 // pred_region
      %s34 = ssub.s32 4480, 4480
      %35 = vsyncadd [#allocation6], %s34
      %s36 = sshll.u32 [#allocation7], 4
      %s37 = int_to_ptr.vmem [resolvable:$true] %s36
      %42 = dma.hbm_to_vmem [thread:$0]  %s2, 4480, %s37, [#allocation6], 128, 128, 8
    $region13: #{tpu_custom_call.1} parent=1 // pred_fallthru
      _
    // Predicated region
    $region14: #{tpu_custom_call.1} parent=1 // pred_check
      _
    $region15: #{tpu_custom_call.1} parent=1 // pred_check_branch
      %44 = sbr.rel (0) target = $region17
    $region16: #{tpu_custom_call.1} parent=1 // pred_region
      %45 = dma.done [#allocation3], 128
    $region17: #{tpu_custom_call.1} parent=1 // pred_fallthru
      _
    // Predicated region
    $region18: #{tpu_custom_call.1} parent=1 // pred_check
      _
    $region19: #{tpu_custom_call.1} parent=1 // pred_check_branch
      %47 = sbr.rel (0) target = $region21
    $region20: #{tpu_custom_call.1} parent=1 // pred_region
      %48 = dma.done [#allocation6], 128
    $region21: #{tpu_custom_call.1} parent=1 // pred_fallthru
      _
    // Predicated region
    $region22: #{tpu_custom_call.1} parent=1 // pred_check
      _
    $region23: #{tpu_custom_call.1} parent=1 // pred_check_branch
      %50 = sbr.rel (0) target = $region25
    $region24: #{tpu_custom_call.1} parent=1 // pred_region
      %51 = dma.done [#allocation6], 4480
    $region25: #{tpu_custom_call.1} parent=1 // pred_fallthru
      _
    %v52 = vld [vmem:[#allocation2] sm:$0xff]
    %v53 = vld [vmem:[#allocation7 + $0x110] sm:$0xff]
    %v54 = vld [vmem:[#allocation7] sm:$0xff]
    %v55 = vld [vmem:[#allocation7 + $0x8] sm:$0xff]
    %v56 = vlaneseq
    %v57 = vshrl.u32 %v56, 7
    %v58 = vsub.s32 0, %v57
    %v59 = vrot.slane %v53, %v58
    %vm60 = vcmask 130048
    %v62 = vsel %vm60, %v52, 0
    %64 = vmatprep.subr.mxu0 0.0
    %65 = vmatpush1.msra.mxu0 0.0
    %66 = vmatprep.subr.mxu0 0.0
    %67 = vmatpush1.msra.mxu0 0.0
    %68 = vmatprep.subr.mxu0 0.0
    %69 = vmatpush1.msra.mxu0 0.0
    %70 = vmatprep.subr.mxu0 0.0
    %71 = vmatpush1.msra.mxu0 0.0
    %72 = vmatprep.subr.mxu0 0.0
    %73 = vmatpush1.msra.mxu0 0.0
    %74 = vmatprep.subr.mxu0 0.0
    %75 = vmatpush1.msra.mxu0 0.0
    %76 = vmatprep.subr.mxu0 0.0
    %77 = vmatpush1.msra.mxu0 0.0
    %78 = vmatprep.subr.mxu0 0.0
    %79 = vmatpush1.msra.mxu0 0.0
    %80 = vmatprep.subr.mxu0 0.0
    %81 = vmatpush1.msra.mxu0 0.0
    %82 = vmatprep.subr.mxu0 0.0
    %83 = vmatpush1.msra.mxu0 0.0
    %84 = vmatprep.subr.mxu0 0.0
    %85 = vmatpush1.msra.mxu0 0.0
    %86 = vmatprep.subr.mxu0 0.0
    %87 = vmatpush1.msra.mxu0 0.0
    %88 = vmatprep.subr.mxu0 0.0
    %89 = vmatpush1.msra.mxu0 0.0
    %90 = vmatprep.subr.mxu0 0.0
    %91 = vmatpush1.msra.mxu0 0.0
    %92 = vmatprep.subr.mxu0 0.0
    %93 = vmatpush1.msra.mxu0 %v55
    %94 = vmatprep.subr.mxu0 0.0
    %95 = vmatpush1.msra.mxu0 %v54
    %96 = vmatprep.subr.mxu0 0.0
    %97 = vmatpush2.msra.mxu0 0.0
    %98 = vmatprep.subr.mxu0 0.0
    %99 = vmatpush2.msra.mxu0 0.0
    %100 = vmatprep.subr.mxu0 0.0
    %101 = vmatpush2.msra.mxu0 0.0
    %102 = vmatprep.subr.mxu0 0.0
    %103 = vmatpush2.msra.mxu0 0.0
    %104 = vmatprep.subr.mxu0 0.0
    %105 = vmatpush2.msra.mxu0 0.0
    %106 = vmatprep.subr.mxu0 0.0
    %107 = vmatpush2.msra.mxu0 0.0
    %108 = vmatprep.subr.mxu0 0.0
    %109 = vmatpush2.msra.mxu0 0.0
    %110 = vmatprep.subr.mxu0 0.0
    %111 = vmatpush2.msra.mxu0 0.0
    %112 = vmatprep.subr.mxu0 0.0
    %113 = vmatpush2.msra.mxu0 0.0
    %114 = vmatprep.subr.mxu0 0.0
    %115 = vmatpush2.msra.mxu0 0.0
    %116 = vmatprep.subr.mxu0 0.0
    %117 = vmatpush2.msra.mxu0 0.0
    %118 = vmatprep.subr.mxu0 0.0
    %119 = vmatpush2.msra.mxu0 0.0
    %120 = vmatprep.subr.mxu0 0.0
    %121 = vmatpush2.msra.mxu0 0.0
    %122 = vmatprep.subr.mxu0 0.0
    %123 = vmatpush2.msra.mxu0 0.0
    %124 = vmatprep.subr.mxu0 0.0
    %125 = vmatpush2.msra.mxu0 0.0
    %126 = vmatprep.subr.mxu0 0.0
    %127 = vmatpush2.msra.mxu0 0.0
    %128 = vmatprep.mubr.f32.mxu0 0.0
    %129 = vmatmul.mubr.f32.gmra.mxu0 %v62
    %v130 = vpop.f32.mrf.mxu0
    %v131 = vadd.f32 %v59, %v130
    %v132 = vpop.f32.mrf.mxu0
    %133 = vdwg.mxu0
    %v134 = vmax.f32 %v131, 0.0
    %v135 = vld [vmem:[#allocation7 + $0x10] sm:$0xff]
    %v136 = vld [vmem:[#allocation7 + $0x18] sm:$0xff]
    %v137 = vld [vmem:[#allocation7 + $0x20] sm:$0xff]
    %v138 = vld [vmem:[#allocation7 + $0x28] sm:$0xff]
    %v139 = vld [vmem:[#allocation7 + $0x30] sm:$0xff]
    %v140 = vld [vmem:[#allocation7 + $0x38] sm:$0xff]
    %v141 = vld [vmem:[#allocation7 + $0x40] sm:$0xff]
    %v142 = vld [vmem:[#allocation7 + $0x48] sm:$0xff]
    %v143 = vld [vmem:[#allocation7 + $0x50] sm:$0xff]
    %v144 = vld [vmem:[#allocation7 + $0x58] sm:$0xff]
    %v145 = vld [vmem:[#allocation7 + $0x60] sm:$0xff]
    %v146 = vld [vmem:[#allocation7 + $0x68] sm:$0xff]
    %v147 = vld [vmem:[#allocation7 + $0x70] sm:$0xff]
    %v148 = vld [vmem:[#allocation7 + $0x78] sm:$0xff]
    %v149 = vld [vmem:[#allocation7 + $0x80] sm:$0xff]
    %v150 = vld [vmem:[#allocation7 + $0x88] sm:$0xff]
    %v151 = vlaneseq
    %v152 = vshrl.u32 %v151, 7
    %v153 = vsub.s32 1, %v152
    %v154 = vrot.slane %v53, %v153
    %155 = vmatprep.subr.mxu0 0.0
    %156 = vmatpush1.msra.mxu0 %v150
    %157 = vmatprep.subr.mxu0 0.0
    %158 = vmatpush1.msra.mxu0 %v149
    %159 = vmatprep.subr.mxu0 0.0
    %160 = vmatpush1.msra.mxu0 %v148
    %161 = vmatprep.subr.mxu0 0.0
    %162 = vmatpush1.msra.mxu0 %v147
    %163 = vmatprep.subr.mxu0 0.0
    %164 = vmatpush1.msra.mxu0 %v146
    %165 = vmatprep.subr.mxu0 0.0
    %166 = vmatpush1.msra.mxu0 %v145
    %167 = vmatprep.subr.mxu0 0.0
    %168 = vmatpush1.msra.mxu0 %v144
    %169 = vmatprep.subr.mxu0 0.0
    %170 = vmatpush1.msra.mxu0 %v143
    %171 = vmatprep.subr.mxu0 0.0
    %172 = vmatpush1.msra.mxu0 %v142
    %173 = vmatprep.subr.mxu0 0.0
    %174 = vmatpush1.msra.mxu0 %v141
    %175 = vmatprep.subr.mxu0 0.0
    %176 = vmatpush1.msra.mxu0 %v140
    %177 = vmatprep.subr.mxu0 0.0
    %178 = vmatpush1.msra.mxu0 %v139
    %179 = vmatprep.subr.mxu0 0.0
    %180 = vmatpush1.msra.mxu0 %v138
    %181 = vmatprep.subr.mxu0 0.0
    %182 = vmatpush1.msra.mxu0 %v137
    %183 = vmatprep.subr.mxu0 0.0
    %184 = vmatpush1.msra.mxu0 %v136
    %185 = vmatprep.subr.mxu0 0.0
    %186 = vmatpush1.msra.mxu0 %v135
    %187 = vmatprep.subr.mxu0 0.0
    %188 = vmatpush2.msra.mxu0 0.0
    %189 = vmatprep.subr.mxu0 0.0
    %190 = vmatpush2.msra.mxu0 0.0
    %191 = vmatprep.subr.mxu0 0.0
    %192 = vmatpush2.msra.mxu0 0.0
    %193 = vmatprep.subr.mxu0 0.0
    %194 = vmatpush2.msra.mxu0 0.0
    %195 = vmatprep.subr.mxu0 0.0
    %196 = vmatpush2.msra.mxu0 0.0
    %197 = vmatprep.subr.mxu0 0.0
    %198 = vmatpush2.msra.mxu0 0.0
    %199 = vmatprep.subr.mxu0 0.0
    %200 = vmatpush2.msra.mxu0 0.0
    %201 = vmatprep.subr.mxu0 0.0
    %202 = vmatpush2.msra.mxu0 0.0
    %203 = vmatprep.subr.mxu0 0.0
    %204 = vmatpush2.msra.mxu0 0.0
    %205 = vmatprep.subr.mxu0 0.0
    %206 = vmatpush2.msra.mxu0 0.0
    %207 = vmatprep.subr.mxu0 0.0
    %208 = vmatpush2.msra.mxu0 0.0
    %209 = vmatprep.subr.mxu0 0.0
    %210 = vmatpush2.msra.mxu0 0.0
    %211 = vmatprep.subr.mxu0 0.0
    %212 = vmatpush2.msra.mxu0 0.0
    %213 = vmatprep.subr.mxu0 0.0
    %214 = vmatpush2.msra.mxu0 0.0
    %215 = vmatprep.subr.mxu0 0.0
    %216 = vmatpush2.msra.mxu0 0.0
    %217 = vmatprep.subr.mxu0 0.0
    %218 = vmatpush2.msra.mxu0 0.0
    %219 = vmatprep.mubr.f32.mxu0 0.0
    %220 = vmatmul.mubr.f32.gmra.mxu0 %v134
    %v221 = vpop.f32.mrf.mxu0
    %v222 = vadd.f32 %v154, %v221
    %v223 = vpop.f32.mrf.mxu0
    %224 = vdwg.mxu0
    %v225 = vmax.f32 %v222, 0.0
    %v226 = vld [vmem:[#allocation7 + $0x90] sm:$0xff]
    %v227 = vld [vmem:[#allocation7 + $0x98] sm:$0xff]
    %v228 = vld [vmem:[#allocation7 + $0xa0] sm:$0xff]
    %v229 = vld [vmem:[#allocation7 + $0xa8] sm:$0xff]
    %v230 = vld [vmem:[#allocation7 + $0xb0] sm:$0xff]
    %v231 = vld [vmem:[#allocation7 + $0xb8] sm:$0xff]
    %v232 = vld [vmem:[#allocation7 + $0xc0] sm:$0xff]
    %v233 = vld [vmem:[#allocation7 + $0xc8] sm:$0xff]
    %v234 = vld [vmem:[#allocation7 + $0xd0] sm:$0xff]
    %v235 = vld [vmem:[#allocation7 + $0xd8] sm:$0xff]
    %v236 = vld [vmem:[#allocation7 + $0xe0] sm:$0xff]
    %v237 = vld [vmem:[#allocation7 + $0xe8] sm:$0xff]
    %v238 = vld [vmem:[#allocation7 + $0xf0] sm:$0xff]
    %v239 = vld [vmem:[#allocation7 + $0xf8] sm:$0xff]
    %v240 = vld [vmem:[#allocation7 + $0x100] sm:$0xff]
    %v241 = vld [vmem:[#allocation7 + $0x108] sm:$0xff]
    %v242 = vlaneseq
    %v243 = vshrl.u32 %v242, 7
    %v244 = vsub.s32 2, %v243
    %v245 = vrot.slane %v53, %v244
    %246 = vmatprep.subr.mxu0 0.0
    %247 = vmatpush1.msra.mxu0 %v241
    %248 = vmatprep.subr.mxu0 0.0
    %249 = vmatpush1.msra.mxu0 %v240
    %250 = vmatprep.subr.mxu0 0.0
    %251 = vmatpush1.msra.mxu0 %v239
    %252 = vmatprep.subr.mxu0 0.0
    %253 = vmatpush1.msra.mxu0 %v238
    %254 = vmatprep.subr.mxu0 0.0
    %255 = vmatpush1.msra.mxu0 %v237
    %256 = vmatprep.subr.mxu0 0.0
    %257 = vmatpush1.msra.mxu0 %v236
    %258 = vmatprep.subr.mxu0 0.0
    %259 = vmatpush1.msra.mxu0 %v235
    %260 = vmatprep.subr.mxu0 0.0
    %261 = vmatpush1.msra.mxu0 %v234
    %262 = vmatprep.subr.mxu0 0.0
    %263 = vmatpush1.msra.mxu0 %v233
    %264 = vmatprep.subr.mxu0 0.0
    %265 = vmatpush1.msra.mxu0 %v232
    %266 = vmatprep.subr.mxu0 0.0
    %267 = vmatpush1.msra.mxu0 %v231
    %268 = vmatprep.subr.mxu0 0.0
    %269 = vmatpush1.msra.mxu0 %v230
    %270 = vmatprep.subr.mxu0 0.0
    %271 = vmatpush1.msra.mxu0 %v229
    %272 = vmatprep.subr.mxu0 0.0
    %273 = vmatpush1.msra.mxu0 %v228
    %274 = vmatprep.subr.mxu0 0.0
    %275 = vmatpush1.msra.mxu0 %v227
    %276 = vmatprep.subr.mxu0 0.0
    %277 = vmatpush1.msra.mxu0 %v226
    %278 = vmatprep.subr.mxu0 0.0
    %279 = vmatpush2.msra.mxu0 0.0
    %280 = vmatprep.subr.mxu0 0.0
    %281 = vmatpush2.msra.mxu0 0.0
    %282 = vmatprep.subr.mxu0 0.0
    %283 = vmatpush2.msra.mxu0 0.0
    %284 = vmatprep.subr.mxu0 0.0
    %285 = vmatpush2.msra.mxu0 0.0
    %286 = vmatprep.subr.mxu0 0.0
    %287 = vmatpush2.msra.mxu0 0.0
    %288 = vmatprep.subr.mxu0 0.0
    %289 = vmatpush2.msra.mxu0 0.0
    %290 = vmatprep.subr.mxu0 0.0
    %291 = vmatpush2.msra.mxu0 0.0
    %292 = vmatprep.subr.mxu0 0.0
    %293 = vmatpush2.msra.mxu0 0.0
    %294 = vmatprep.subr.mxu0 0.0
    %295 = vmatpush2.msra.mxu0 0.0
    %296 = vmatprep.subr.mxu0 0.0
    %297 = vmatpush2.msra.mxu0 0.0
    %298 = vmatprep.subr.mxu0 0.0
    %299 = vmatpush2.msra.mxu0 0.0
    %300 = vmatprep.subr.mxu0 0.0
    %301 = vmatpush2.msra.mxu0 0.0
    %302 = vmatprep.subr.mxu0 0.0
    %303 = vmatpush2.msra.mxu0 0.0
    %304 = vmatprep.subr.mxu0 0.0
    %305 = vmatpush2.msra.mxu0 0.0
    %306 = vmatprep.subr.mxu0 0.0
    %307 = vmatpush2.msra.mxu0 0.0
    %308 = vmatprep.subr.mxu0 0.0
    %309 = vmatpush2.msra.mxu0 0.0
    %310 = vmatprep.mubr.f32.mxu0 0.0
    %311 = vmatmul.mubr.f32.gmra.mxu0 %v225
    %v312 = vpop.f32.mrf.mxu0
    %v313 = vadd.f32 %v245, %v312
    %v314 = vpop.f32.mrf.mxu0
    %315 = vdwg.mxu0
    %316 = vrot.lane.b32.xlu0 %v313, 64
    %v317 = vpop.permute.xlu0 %316
    %v318 = vmax.f32 %v317, -20.0
    %v319 = vmin.f32 %v318, 2.0
    %v320 = vmul.f32 %v319, 1.442695
    %v321 = vpow.pop %v320
    %v322 = vld [vmem:[#allocation5] sm:$0xff]
    %v323 = vmul.f32 %v321, %v322
    %v324 = vadd.f32 %v313, %v323
    %v325 = vtanh.pop %v324
    %326 = vst [vmem:[#allocation8] sm:$0xff] %v325
    // Predicated region
    $region26: #{tpu_custom_call.1} parent=1 // pred_check
      _
    $region27: #{tpu_custom_call.1} parent=1 // pred_check_branch
      %328 = sbr.rel (0) target = $region29
    $region28: #{tpu_custom_call.1} parent=1 // pred_region
      %s330 = ssub.s32 128, 128
      %331 = vsyncadd [#allocation4], %s330
      %s333 = sshll.u32 [#allocation8], 4
      %s334 = int_to_ptr.vmem [resolvable:$true] %s333
      %336 = dma.vmem_to_hbm [thread:$0]  %s334, 128, %s3, [#allocation4]
    $region29: #{tpu_custom_call.1} parent=1 // pred_fallthru
      _
    // Predicated region
    $region30: #{tpu_custom_call.1} parent=1 // pred_check
      _
    $region31: #{tpu_custom_call.1} parent=1 // pred_check_branch
      %338 = sbr.rel (0) target = $region33
    $region32: #{tpu_custom_call.1} parent=1 // pred_region
      %339 = dma.done [#allocation4], 128
    $region33: #{tpu_custom_call.1} parent=1 // pred_fallthru
      _
    %340 = vsyncpa [#allocation3], 1
    %341 = vsyncpa [#allocation6], 1
    %342 = vsyncpa [#allocation4], 1

</llo_original>
